<compile_context>
chip_gen: v7x
topology: tpu7x:2x2x1
jax: 0.10.0
libtpu: 0.0.40
codegen_flags: <defaults>
</compile_context>

<pallas_src>
import jax
import jax.numpy as jnp
from jax.experimental import pallas as pl
from jax.experimental.pallas import tpu as pltpu


def _adaptive_weighter_kernel(packed_ref, out_ref):
    # packed_ref: SMEM (4,) f32 = [alpha_logit, ce_loss, crf_loss, pad]
    # out_ref:    VMEM (1, 128) f32; lane 0 = total_loss, lane 1 = alpha
    logit = packed_ref[0]
    ce = packed_ref[1]
    crf = packed_ref[2]

    # Broadcast the scalar logit onto one vreg row; exp stays on the EUP and
    # the blend on the VPU (no scalar-unit transcendentals).
    logit_v = jnp.full((1, 128), logit, dtype=jnp.float32)
    alpha_v = 1.0 / (1.0 + jnp.exp(-logit_v))          # sigmoid
    total_v = alpha_v * ce + (1.0 - alpha_v) * crf

    # Pack both results into a single lane-dense row: lane 0 -> total, lane 1
    # (and the rest) -> alpha.  One unmasked-row store, one writeback.
    lane = jax.lax.broadcasted_iota(jnp.int32, (1, 128), 1)
    out_ref[...] = jnp.where(lane == 0, total_v, alpha_v)


@jax.jit
def adaptive_weighter(alpha_logit, ce_loss, crf_loss):
    """JAX wrapper. All args are scalar float32 (0-d arrays or Python floats).

    Returns (total_loss, alpha) as scalar float32 arrays.
    """
    packed = jnp.stack(
        [
            jnp.asarray(alpha_logit, jnp.float32).reshape(()),
            jnp.asarray(ce_loss, jnp.float32).reshape(()),
            jnp.asarray(crf_loss, jnp.float32).reshape(()),
            jnp.float32(0.0),  # pad to a power-of-two word count
        ]
    )  # (4,) float32

    out = pl.pallas_call(
        _adaptive_weighter_kernel,
        out_shape=jax.ShapeDtypeStruct((1, 128), jnp.float32),
        grid=(),
        in_specs=[pl.BlockSpec(memory_space=pltpu.SMEM)],
        out_specs=pl.BlockSpec((1, 128), lambda: (0, 0), memory_space=pltpu.VMEM),
    )(packed)

    total_loss = out[0, 0]
    alpha = out[0, 1]
    return total_loss, alpha


if __name__ == "__main__":
    # Deterministic parameter init, mirroring nn.Parameter(logit(alpha_init)).
    alpha_init = 0.5
    alpha_logit = jnp.log(alpha_init / (1.0 - alpha_init)).astype(jnp.float32)  # = 0.0

    # Deterministic example "losses" (scalars, like CE / CRF loss values).
    key = jax.random.PRNGKey(0)
    k1, k2 = jax.random.split(key)
    ce_loss = jax.random.uniform(k1, (), jnp.float32, 0.1, 2.0)
    crf_loss = jax.random.uniform(k2, (), jnp.float32, 0.1, 2.0)

    total_loss, alpha = adaptive_weighter(alpha_logit, ce_loss, crf_loss)
    jax.block_until_ready((total_loss, alpha))

    # Reference check in plain JAX.
    alpha_ref = jax.nn.sigmoid(alpha_logit)
    total_ref = alpha_ref * ce_loss + (1.0 - alpha_ref) * crf_loss
    assert jnp.allclose(alpha, alpha_ref, atol=1e-6), (alpha, alpha_ref)
    assert jnp.allclose(total_loss, total_ref, atol=1e-6), (total_loss, total_ref)

    print("KERNEL_OK")
</pallas_src>

<mosaic_0001>
module attributes {stable_mosaic.version = 11 : i64} {
  func.func @_adaptive_weighter_kernel(%arg0: memref<4xf32, #tpu.memory_space<smem>>, %arg1: memref<1x128xf32, #tpu.memory_space<vmem>>) attributes {dimension_semantics = [], scalar_prefetch = 0 : i64, scratch_operands = 0 : i64, tpu.core_type = #tpu.core_type<tc>} {
    %c0 = arith.constant 0 : index
    %0 = memref.load %arg0[%c0] : memref<4xf32, #tpu.memory_space<smem>>
    %c1 = arith.constant 1 : index
    %1 = memref.load %arg0[%c1] : memref<4xf32, #tpu.memory_space<smem>>
    %c2 = arith.constant 2 : index
    %2 = memref.load %arg0[%c2] : memref<4xf32, #tpu.memory_space<smem>>
    %3 = vector.broadcast %0 : f32 to vector<1x128xf32>
    %cst = arith.constant 0.000000e+00 : f32
    %4 = vector.broadcast %cst : f32 to vector<1x128xf32>
    %5 = arith.subf %4, %3 : vector<1x128xf32>
    %6 = math.exp %5 : vector<1x128xf32>
    %cst_0 = arith.constant 1.000000e+00 : f32
    %7 = vector.broadcast %cst_0 : f32 to vector<1x128xf32>
    %8 = arith.addf %7, %6 : vector<1x128xf32>
    %cst_1 = arith.constant 1.000000e+00 : f32
    %9 = vector.broadcast %cst_1 : f32 to vector<1x128xf32>
    %10 = arith.divf %9, %8 : vector<1x128xf32>
    %11 = vector.broadcast %1 : f32 to vector<1x128xf32>
    %12 = arith.mulf %10, %11 : vector<1x128xf32>
    %cst_2 = arith.constant 1.000000e+00 : f32
    %13 = vector.broadcast %cst_2 : f32 to vector<1x128xf32>
    %14 = arith.subf %13, %10 : vector<1x128xf32>
    %15 = vector.broadcast %2 : f32 to vector<1x128xf32>
    %16 = arith.mulf %14, %15 : vector<1x128xf32>
    %17 = arith.addf %12, %16 : vector<1x128xf32>
    %18 = tpu.iota {dimensions = array<i32: 1>} : vector<1x128xi32>
    %c0_i32 = arith.constant 0 : i32
    %19 = vector.broadcast %c0_i32 : i32 to vector<1x128xi32>
    %20 = arith.cmpi eq, %18, %19 : vector<1x128xi32>
    %21 = arith.select %20, %17, %10 : vector<1x128xi1>, vector<1x128xf32>
    %c0_3 = arith.constant 0 : index
    %c0_4 = arith.constant 0 : index
    %22 = vector.load %arg1[%c0_3, %c0_4] : memref<1x128xf32, #tpu.memory_space<vmem>>, vector<1x128xf32>
    tpu.vector_store %arg1[%c0_3, %c0_4], %21 {strides = array<i32>} : memref<1x128xf32, #tpu.memory_space<vmem>>, vector<1x128xf32>,
    return
  }
}

</mosaic_0001>

<llo_original>
// kernel: adaptive_weighter.1
$region0: #{adaptive_weighter.1}
  #allocation0 [shape = 'u32[]', space=smem, size = 0x4, offset = 0x4, fixed_abs, tag = 'smem constant byte address 0x4 - core index']
  #allocation1 [shape = 'u32[144,128]{1,0:T(1,128)}', space=vmem, size = 0x12000, scoped, tag = 'internal scratch']
  %s0 = inlined_call_operand.vmem [shape: f32[4], index: 0, kind: input, shape index: {}]
  %s1 = inlined_call_operand.vmem [shape: f32[1,128], index: 1, kind: output, shape index: {}]
  %s2 = sld [smem:[#allocation0]]
  $region18: #{adaptive_weighter.1} parent=0
    _
  %s4 = ssub.s32 1, %s2
  %s5 = scalar_select 0, %s4, %s2
  $region1: #{adaptive_weighter.1} parent=0
    #allocation2 [shape = 'u8[512]{0}', space=smem, size = 0x200, scoped, tag = 'input window, operand 0, single buffered']
    #allocation3 [shape = 's32[1]{0}', space=sflag, size = 0x4, scoped, tag = 'scoped memory for adaptive_weighter.1']
    %6 = vsyncpa [#allocation3], 0
    // Predicated region
    $region2: #{adaptive_weighter.1} parent=1 // pred_check
      _
    $region3: #{adaptive_weighter.1} parent=1 // pred_check_branch
      %8 = sbr.rel (0) target = $region5
    $region4: #{adaptive_weighter.1} parent=1 // pred_region
      %s10 = ssub.s32 16, 16
      %11 = vsyncadd [#allocation3], %s10
      %s13 = sshll.u32 %s0, 4
      %s14 = int_to_ptr.vmem [resolvable:$true] %s13
      %16 = dma.vmem_to_smem %s14, 16, [#allocation2], [#allocation3]
    $region5: #{adaptive_weighter.1} parent=1 // pred_fallthru
      _
    // Predicated region
    $region6: #{adaptive_weighter.1} parent=1 // pred_check
      _
    $region7: #{adaptive_weighter.1} parent=1 // pred_check_branch
      %18 = sbr.rel (0) target = $region9
    $region8: #{adaptive_weighter.1} parent=1 // pred_region
      %19 = dma.done [#allocation3], 16
    $region9: #{adaptive_weighter.1} parent=1 // pred_fallthru
      _
    %20 = sfence
    %s21 = sld [smem:[#allocation2]]
    %s22 = sld [smem:[#allocation2 + $0x1]]
    %s23 = sld [smem:[#allocation2 + $0x2]]
    %v24 = vstv %s21
    %v25 = vsub.f32 0.0, %v24
    %v26 = vmul.f32 %v25, 1.442695
    %v27 = vpow.pop %v26
    %v28 = vadd.f32 %v27, 1.0
    %v29 = vrcp.pop %v28
    %v30 = vmul.f32 1.0, %v29
    %v31 = vstv %s22
    %v32 = vmul.f32 %v30, %v31
    %v33 = vsub.f32 1.0, %v30
    %v34 = vstv %s23
    %v35 = vmul.f32 %v33, %v34
    %v36 = vadd.f32 %v32, %v35
    %v37 = vlaneseq
    %v38 = vand.u32 %v37, 127
    %vm39 = vcmp.eq.s32.totalorder %v38, 0
    %v40 = vsel %vm39, %v36, %v30
    %41 = vst [vmem:[%s1] sm:$0x1] %v40
    // Predicated region
    $region10: #{adaptive_weighter.1} parent=1 // pred_check
      _
    $region11: #{adaptive_weighter.1} parent=1 // pred_check_branch
      %43 = sbr.rel (0) target = $region13
    $region12: #{adaptive_weighter.1} parent=1 // pred_region
      _
    $region13: #{adaptive_weighter.1} parent=1 // pred_fallthru
      _
    // Predicated region
    $region14: #{adaptive_weighter.1} parent=1 // pred_check
      _
    $region15: #{adaptive_weighter.1} parent=1 // pred_check_branch
      %45 = sbr.rel (0) target = $region17
    $region16: #{adaptive_weighter.1} parent=1 // pred_region
      _
    $region17: #{adaptive_weighter.1} parent=1 // pred_fallthru
      _
    %46 = vsyncpa [#allocation3], 1

</llo_original>
